<compile_context>
chip_gen: v5e
topology: v5e:2x2
jax: 0.10.0
libtpu: 0.0.40
codegen_flags: <defaults>
</compile_context>

<pallas_src>
import functools

import jax
import jax.numpy as jnp
import numpy as np
from jax import lax
from jax.experimental import pallas as pl
from jax.experimental.pallas import tpu as pltpu


def _round_up(x: int, m: int) -> int:
    return ((x + m - 1) // m) * m


# ----------------------------------------------------------------------------
# Pallas kernel: fused (block-diagonal) two-tower MLP + rsqrt-folded L2 score
# ----------------------------------------------------------------------------
def _make_fused_kernel(n_layers: int, half_width: int):
    """Kernel over one batch tile.

    refs = [x, (W_0, b_0), ..., (W_{L-1}, b_{L-1}), out]
      x   : (TB, 2*D0) f32   -- [query | candidate] features for this tile
      W_i : fused block-diagonal weights (resident across the whole grid)
      b_i : (1, out_i) f32
      out : (TB, 1)    f32   -- per-row score
    """

    def kernel(x_ref, *refs):
        out_ref = refs[-1]
        h = x_ref[...]  # f32 activations
        for li in range(n_layers):
            w_ref, b_ref = refs[2 * li], refs[2 * li + 1]
            w = w_ref[...]
            # MXU matmul; operands may be bf16 (v6e/v7x), accumulation is f32.
            h = jnp.dot(h.astype(w.dtype), w,
                        preferred_element_type=jnp.float32) + b_ref[...]
            if li < n_layers - 1:
                h = jnp.maximum(h, 0.0)
        # Final fused activation layout: [ q | 0.. ][ c | 0.. ], each half
        # `half_width` lanes wide (multiple of 128) -> vreg-aligned slices.
        q = h[:, :half_width]
        c = h[:, half_width:]
        s = jnp.sum(q * c, axis=1, keepdims=True)    # q . c
        nq = jnp.sum(q * q, axis=1, keepdims=True)   # ||q||^2
        nc = jnp.sum(c * c, axis=1, keepdims=True)   # ||c||^2
        eps2 = 1e-24                                 # (torch eps = 1e-12)**2
        out_ref[...] = (s
                        * lax.rsqrt(jnp.maximum(nq, eps2))
                        * lax.rsqrt(jnp.maximum(nc, eps2)))

    return kernel


# ----------------------------------------------------------------------------
# Host-side parameter fusion: blockdiag(Wq_i, Wc_i), lane-aligned last layer
# ----------------------------------------------------------------------------
def _fuse_tower_params(q_params, c_params, compute_dtype):
    """q_params/c_params: list of (W[in,out] f32, b[1,out] f32), same depth.

    Returns (fused list of (W, b), half_width) where the last fused layer puts
    the query output in lanes [0, d_out) and the candidate output in lanes
    [half_width, half_width + d_out), half_width = round_up(d_out, 128).
    """
    assert len(q_params) == len(c_params), "towers must have same depth"
    n = len(q_params)
    d_out_q = q_params[-1][0].shape[1]
    d_out_c = c_params[-1][0].shape[1]
    assert d_out_q == d_out_c, "tower output dims must match for the dot"
    half = _round_up(d_out_q, 128)

    fused = []
    for li, ((wq, bq), (wc, bc)) in enumerate(zip(q_params, c_params)):
        diq, doq = wq.shape
        dic, doc = wc.shape
        if li < n - 1:
            w = jnp.zeros((diq + dic, doq + doc), jnp.float32)
            w = w.at[:diq, :doq].set(wq)
            w = w.at[diq:, doq:].set(wc)
            b = jnp.concatenate([bq, bc], axis=1)
        else:
            # Last layer: pad each half to a 128-lane boundary.
            w = jnp.zeros((diq + dic, 2 * half), jnp.float32)
            w = w.at[:diq, :doq].set(wq)
            w = w.at[diq:, half:half + doc].set(wc)
            b = jnp.zeros((1, 2 * half), jnp.float32)
            b = b.at[:, :doq].set(bq)
            b = b.at[:, half:half + doc].set(bc)
        # MXU operands may be narrowed (bf16); bias/elementwise stay f32.
        fused.append((w.astype(compute_dtype), b.astype(jnp.float32)))
    return fused, half


# ----------------------------------------------------------------------------
# Wrapper: batch-gridded pallas_call with resident weights
# ----------------------------------------------------------------------------
def two_tower_pallas(q_in, c_in, q_params, c_params, *,
                     block_b: int = 128,
                     compute_dtype=jnp.float32):
    """q_in/c_in: (B, D0) f32.  *_params: list of (W (in,out), b (1,out)) f32.

    Returns per-row scores, shape (B,) f32.
    """
    B, d0q = q_in.shape
    _, d0c = c_in.shape

    fused, half = _fuse_tower_params(q_params, c_params, compute_dtype)
    n_layers = len(fused)

    # Fused feature matrix [query | candidate].
    x = jnp.concatenate([q_in, c_in], axis=1).astype(jnp.float32)  # (B, d0q+d0c)

    # Batch tile (multiple of 8 sublanes); pad B up to a whole number of tiles.
    tb = min(block_b, _round_up(B, 8))
    b_pad = _round_up(B, tb)
    if b_pad != B:
        x = jnp.pad(x, ((0, b_pad - B), (0, 0)))
    grid = (b_pad // tb,)

    in_specs = [pl.BlockSpec((tb, d0q + d0c), lambda i: (i, 0))]
    flat_inputs = [x]
    for w, b in fused:
        in_specs.append(pl.BlockSpec(w.shape, lambda i: (0, 0)))  # resident
        in_specs.append(pl.BlockSpec(b.shape, lambda i: (0, 0)))  # resident
        flat_inputs += [w, b]
    out_specs = pl.BlockSpec((tb, 1), lambda i: (i, 0))

    flops = (2 * b_pad * sum(w.shape[0] * w.shape[1] for w, _ in fused)
             + 6 * b_pad * 2 * half)
    bytes_accessed = (x.size * x.dtype.itemsize
                      + sum(w.size * w.dtype.itemsize + b.size * b.dtype.itemsize
                            for w, b in fused)
                      + b_pad * 4)
    cost = pl.CostEstimate(flops=flops,
                           transcendentals=2 * b_pad,
                           bytes_accessed=bytes_accessed)

    out = pl.pallas_call(
        _make_fused_kernel(n_layers, half),
        grid=grid,
        in_specs=in_specs,
        out_specs=out_specs,
        out_shape=jax.ShapeDtypeStruct((b_pad, 1), jnp.float32),
        compiler_params=pltpu.CompilerParams(
            dimension_semantics=("parallel",)),
        cost_estimate=cost,
    )(*flat_inputs)
    return out[:B, 0]  # (B,)


# ----------------------------------------------------------------------------
# Plain-JAX glue: embedding gather + concat, parameter construction, reference
# ----------------------------------------------------------------------------
def tower_input(x_cate, x_num, emb_tables):
    """Replicates torch.cat([emb(x_cate[:, i]) ...] + [x_num], dim=1)."""
    # TODO(synk): embedding gather + concat kept in plain JAX; per-row gathers
    # into 8-wide embedding columns have no efficient tile-aligned Pallas form.
    parts = [jnp.take(tbl, x_cate[:, i], axis=0) for i, tbl in enumerate(emb_tables)]
    parts.append(x_num)
    return jnp.concatenate(parts, axis=1)


def init_tower_params(key, vocab_sizes, embedding_dim, layer_dims):
    keys = jax.random.split(key, len(vocab_sizes) + 2 * len(layer_dims))
    emb_tables = [
        0.1 * jax.random.normal(keys[i], (v, embedding_dim), dtype=jnp.float32)
        for i, v in enumerate(vocab_sizes)
    ]
    params = []
    off = len(vocab_sizes)
    for li, (din, dout) in enumerate(layer_dims):
        w = 0.1 * jax.random.normal(keys[off + 2 * li], (din, dout), dtype=jnp.float32)
        b = 0.01 * jax.random.normal(keys[off + 2 * li + 1], (1, dout), dtype=jnp.float32)
        params.append((w, b))
    return emb_tables, params


def tower_reference(x, params):
    h = x
    for i, (w, b) in enumerate(params):
        h = h @ w + b
        if i < len(params) - 1:
            h = jnp.maximum(h, 0.0)
    norm = jnp.sqrt(jnp.sum(h * h, axis=1, keepdims=True))
    return h / jnp.maximum(norm, 1e-12)


if __name__ == "__main__":
    # --- model config (small, consistent with TowerModel asserts) -----------
    embedding_dim = 8
    num_continuous = 16
    q_vocab_sizes = [20, 30]           # query tower: 2 categorical features
    c_vocab_sizes = [25, 15]           # candidate tower: 2 categorical features
    d0 = len(q_vocab_sizes) * embedding_dim + num_continuous   # 32
    layer_dims = [(d0, 64), (64, 32)]  # Linear+ReLU, then Linear
    batch = 256                        # -> grid=(2,) with TB=128

    key = jax.random.PRNGKey(0)
    k_qp, k_cp, k_qc, k_qn, k_cc, k_cn = jax.random.split(key, 6)

    q_emb, q_params = init_tower_params(k_qp, q_vocab_sizes, embedding_dim, layer_dims)
    c_emb, c_params = init_tower_params(k_cp, c_vocab_sizes, embedding_dim, layer_dims)

    # --- example inputs ------------------------------------------------------
    q_cate = jnp.stack(
        [jax.random.randint(k, (batch,), 0, v, dtype=jnp.int32)
         for k, v in zip(jax.random.split(k_qc, len(q_vocab_sizes)), q_vocab_sizes)],
        axis=1)
    q_num = jax.random.normal(k_qn, (batch, num_continuous), dtype=jnp.float32)
    c_cate = jnp.stack(
        [jax.random.randint(k, (batch,), 0, v, dtype=jnp.int32)
         for k, v in zip(jax.random.split(k_cc, len(c_vocab_sizes)), c_vocab_sizes)],
        axis=1)
    c_num = jax.random.normal(k_cn, (batch, num_continuous), dtype=jnp.float32)

    # embedding gather + concat (glue, plain JAX)
    q_in = tower_input(q_cate, q_num, q_emb)   # (B, 32)
    c_in = tower_input(c_cate, c_num, c_emb)   # (B, 32)

    # --- Pallas kernel (f32 MXU operands, tight check) -----------------------
    out = two_tower_pallas(q_in, c_in, q_params, c_params, block_b=128)
    out = jax.block_until_ready(out)

    ref = jnp.sum(tower_reference(q_in, q_params) * tower_reference(c_in, c_params),
                  axis=1)
    np.testing.assert_allclose(np.asarray(out), np.asarray(ref), rtol=1e-5, atol=1e-5)

    # --- Pallas kernel (bf16 MXU operands / f32 accumulate, v6e/v7x path) ----
    out_bf16 = two_tower_pallas(q_in, c_in, q_params, c_params,
                                block_b=128, compute_dtype=jnp.bfloat16)
    out_bf16 = jax.block_until_ready(out_bf16)
    np.testing.assert_allclose(np.asarray(out_bf16), np.asarray(ref),
                               rtol=0.0, atol=5e-2)

    print("KERNEL_OK")
</pallas_src>

<mosaic_0001>
module attributes {stable_mosaic.version = 11 : i64} {
  func.func @kernel(%arg0: i32, %arg1: memref<128x64xf32, #tpu.memory_space<vmem>>, %arg2: memref<64x128xf32, #tpu.memory_space<vmem>>, %arg3: memref<1x128xf32, #tpu.memory_space<vmem>>, %arg4: memref<128x256xf32, #tpu.memory_space<vmem>>, %arg5: memref<1x256xf32, #tpu.memory_space<vmem>>, %arg6: memref<128x1xf32, #tpu.memory_space<vmem>>) attributes {dimension_semantics = [#tpu.dimension_semantics<parallel>], iteration_bounds = array<i64: 2>, scalar_prefetch = 0 : i64, scratch_operands = 0 : i64, tpu.core_type = #tpu.core_type<tc>, window_params = [{transform_indices = @transform_0, window_bounds = array<i64: 128, 64>}, {pipeline_mode = #tpu.pipeline_mode<synchronous>, transform_indices = @transform_1, window_bounds = array<i64: 64, 128>}, {pipeline_mode = #tpu.pipeline_mode<synchronous>, transform_indices = @transform_2, window_bounds = array<i64: 1, 128>}, {pipeline_mode = #tpu.pipeline_mode<synchronous>, transform_indices = @transform_3, window_bounds = array<i64: 128, 256>}, {pipeline_mode = #tpu.pipeline_mode<synchronous>, transform_indices = @transform_4, window_bounds = array<i64: 1, 256>}, {transform_indices = @transform_5, window_bounds = array<i64: 128, 1>}]} {
    %c0 = arith.constant 0 : index
    %c0_0 = arith.constant 0 : index
    %0 = vector.load %arg1[%c0, %c0_0] : memref<128x64xf32, #tpu.memory_space<vmem>>, vector<128x64xf32>
    %c0_1 = arith.constant 0 : index
    %c0_2 = arith.constant 0 : index
    %1 = vector.load %arg2[%c0_1, %c0_2] : memref<64x128xf32, #tpu.memory_space<vmem>>, vector<64x128xf32>
    %cst = arith.constant dense<0.000000e+00> : vector<128x128xf32>
    %2 = tpu.matmul %0, %1, %cst {dimension_numbers = #tpu.dot_dimension_numbers<[1], [0], [0], [1], [0, 0, 1, 1], [], []>} : vector<128x64xf32>, vector<64x128xf32>, vector<128x128xf32> -> vector<128x128xf32>
    %c0_3 = arith.constant 0 : index
    %c0_4 = arith.constant 0 : index
    %3 = vector.load %arg3[%c0_3, %c0_4] : memref<1x128xf32, #tpu.memory_space<vmem>>, vector<1x128xf32>
    %4 = vector.broadcast %3 : vector<1x128xf32> to vector<128x128xf32>
    %5 = arith.addf %2, %4 : vector<128x128xf32>
    %cst_5 = arith.constant 0.000000e+00 : f32
    %6 = vector.broadcast %cst_5 : f32 to vector<128x128xf32>
    %7 = arith.maximumf %5, %6 : vector<128x128xf32>
    %c0_6 = arith.constant 0 : index
    %c0_7 = arith.constant 0 : index
    %8 = vector.load %arg4[%c0_6, %c0_7] : memref<128x256xf32, #tpu.memory_space<vmem>>, vector<128x256xf32>
    %cst_8 = arith.constant dense<0.000000e+00> : vector<128x256xf32>
    %9 = tpu.matmul %7, %8, %cst_8 {dimension_numbers = #tpu.dot_dimension_numbers<[1], [0], [0], [1], [0, 0, 1, 1], [], []>} : vector<128x128xf32>, vector<128x256xf32>, vector<128x256xf32> -> vector<128x256xf32>
    %c0_9 = arith.constant 0 : index
    %c0_10 = arith.constant 0 : index
    %10 = vector.load %arg5[%c0_9, %c0_10] : memref<1x256xf32, #tpu.memory_space<vmem>>, vector<1x256xf32>
    %11 = vector.broadcast %10 : vector<1x256xf32> to vector<128x256xf32>
    %12 = arith.addf %9, %11 : vector<128x256xf32>
    %13 = vector.extract_strided_slice %12 {offsets = [0, 0], sizes = [128, 128], strides = [1, 1]} : vector<128x256xf32> to vector<128x128xf32>
    %14 = vector.extract_strided_slice %12 {offsets = [0, 128], sizes = [128, 128], strides = [1, 1]} : vector<128x256xf32> to vector<128x128xf32>
    %15 = arith.mulf %13, %14 : vector<128x128xf32>
    %cst_11 = arith.constant dense<0.000000e+00> : vector<128xf32>
    %16 = vector.multi_reduction <add>, %15, %cst_11 [1] : vector<128x128xf32> to vector<128xf32>
    %17 = vector.shape_cast %16 : vector<128xf32> to vector<128x1xf32>
    %18 = arith.mulf %13, %13 : vector<128x128xf32>
    %cst_12 = arith.constant dense<0.000000e+00> : vector<128xf32>
    %19 = vector.multi_reduction <add>, %18, %cst_12 [1] : vector<128x128xf32> to vector<128xf32>
    %20 = vector.shape_cast %19 : vector<128xf32> to vector<128x1xf32>
    %21 = arith.mulf %14, %14 : vector<128x128xf32>
    %cst_13 = arith.constant dense<0.000000e+00> : vector<128xf32>
    %22 = vector.multi_reduction <add>, %21, %cst_13 [1] : vector<128x128xf32> to vector<128xf32>
    %23 = vector.shape_cast %22 : vector<128xf32> to vector<128x1xf32>
    %cst_14 = arith.constant 1.000000e-24 : f32
    %24 = vector.broadcast %cst_14 : f32 to vector<128x1xf32>
    %25 = arith.maximumf %20, %24 : vector<128x1xf32>
    %26 = math.rsqrt %25 : vector<128x1xf32>
    %27 = arith.mulf %17, %26 : vector<128x1xf32>
    %cst_15 = arith.constant 1.000000e-24 : f32
    %28 = vector.broadcast %cst_15 : f32 to vector<128x1xf32>
    %29 = arith.maximumf %23, %28 : vector<128x1xf32>
    %30 = math.rsqrt %29 : vector<128x1xf32>
    %31 = arith.mulf %27, %30 : vector<128x1xf32>
    %c0_16 = arith.constant 0 : index
    %c0_17 = arith.constant 0 : index
    %32 = vector.load %arg6[%c0_16, %c0_17] : memref<128x1xf32, #tpu.memory_space<vmem>>, vector<128x1xf32>
    tpu.vector_store %arg6[%c0_16, %c0_17], %31 {strides = array<i32>} : memref<128x1xf32, #tpu.memory_space<vmem>>, vector<128x1xf32>,
    return
  }
  func.func @transform_0(%arg0: i32) -> (i32, i32) {
    %c0_i32 = arith.constant 0 : i32
    %c0_i32_0 = arith.constant 0 : i32
    return %arg0, %c0_i32 : i32, i32
  }
  func.func @transform_1(%arg0: i32) -> (i32, i32) {
    %c0_i32 = arith.constant 0 : i32
    %c0_i32_0 = arith.constant 0 : i32
    %c0_i32_1 = arith.constant 0 : i32
    return %c0_i32, %c0_i32_0 : i32, i32
  }
  func.func @transform_2(%arg0: i32) -> (i32, i32) {
    %c0_i32 = arith.constant 0 : i32
    %c0_i32_0 = arith.constant 0 : i32
    %c0_i32_1 = arith.constant 0 : i32
    return %c0_i32, %c0_i32_0 : i32, i32
  }
  func.func @transform_3(%arg0: i32) -> (i32, i32) {
    %c0_i32 = arith.constant 0 : i32
    %c0_i32_0 = arith.constant 0 : i32
    %c0_i32_1 = arith.constant 0 : i32
    return %c0_i32, %c0_i32_0 : i32, i32
  }
  func.func @transform_4(%arg0: i32) -> (i32, i32) {
    %c0_i32 = arith.constant 0 : i32
    %c0_i32_0 = arith.constant 0 : i32
    %c0_i32_1 = arith.constant 0 : i32
    return %c0_i32, %c0_i32_0 : i32, i32
  }
  func.func @transform_5(%arg0: i32) -> (i32, i32) {
    %c0_i32 = arith.constant 0 : i32
    %c0_i32_0 = arith.constant 0 : i32
    return %arg0, %c0_i32 : i32, i32
  }
}

</mosaic_0001>

<llo_original>
// kernel: tpu_custom_call.1
$region0: #{tpu_custom_call.1}
  #allocation0 [shape = 'u32[]', space=smem, size = 0x4, offset = 0x4, fixed_abs, tag = 'smem constant byte address 0x4 - core index']
  #allocation1 [shape = 'u32[72,128]{1,0:T(1,128)}', space=vmem, size = 0x9000, scoped, tag = 'internal scratch']
  %s0 = inlined_call_operand.vmem [shape: f32[256,64], index: 0, kind: input, shape index: {}]
  %s1 = inlined_call_operand.vmem [shape: f32[64,128], index: 1, kind: input, shape index: {}]
  %s2 = inlined_call_operand.vmem [shape: f32[1,128], index: 2, kind: input, shape index: {}]
  %s3 = inlined_call_operand.vmem [shape: f32[128,256], index: 3, kind: input, shape index: {}]
  %s4 = inlined_call_operand.vmem [shape: f32[1,256], index: 4, kind: input, shape index: {}]
  %s5 = inlined_call_operand.vmem [shape: f32[256,1], index: 5, kind: output, shape index: {}]
  %s6 = sld [smem:[#allocation0]]
  $region53: #{tpu_custom_call.1} parent=0
    _
  %s8 = ssub.s32 1, %s6
  %s9 = scalar_select 0, %s8, %s6
  loop: start=0, step=1, limit=4
  $region2: #{tpu_custom_call.1} parent=0 // loop_pre_header
    _
  $region3: #{tpu_custom_call.1} parent=0 // loop_header
    %s11 = sphi 0, %s15
    %p12 = scmp.ge.s32.totalorder %s11, 4
    %s21 = sphi 0, %s23
    %s24 = sphi 0, %s21
    %s25 = sphi 0, %s24
    %s41 = sphi 0, %s25
    %s45 = sphi 0, %s45
    %s47 = sphi 0, %s45
    %s48 = sphi 0, %s47
    %s62 = sphi 0, %s48
    %s66 = sphi 0, %s66
    %s68 = sphi 0, %s66
    %s69 = sphi 0, %s68
    %s83 = sphi 0, %s69
    %s87 = sphi 0, %s87
    %s89 = sphi 0, %s87
    %s90 = sphi 0, %s89
    %s104 = sphi 0, %s90
    %s108 = sphi 0, %s108
    %s110 = sphi 0, %s108
    %s111 = sphi 0, %s110
    %s125 = sphi 0, %s111
    %s131 = sphi 0, %s133
    %s134 = sphi 0, %s131
    %s135 = sphi 0, %s134
    %s151 = sphi 0, %s135
  $region4: #{tpu_custom_call.1} parent=0 // loop_header_branch
    %14 = sbr.rel (%p12) target = $region8
  $region5: #{tpu_custom_call.1} parent=0 // loop_body
    %s16 = ssub.s32 %s11, 1
    %s17 = ssub.s32 %s11, 2
    %s18 = sadd.s32 %s11, 1
    %s19 = ssub.s32 %s11, %s18
    %p20 = scmp.eq.s32.totalorder %s19, 0
    %s22 = sadd.s32 %s21, 1
    %s23 = scalar_select %p20, %s21, %s22
    %p26 = pneg %p20
    %p27 = scmp.eq.s32.totalorder %s11, 1
    %p28 = por %p26, %p27
    %p29 = scmp.ne.s32.totalorder %s21, %s24
    %p30 = scmp.eq.s32.totalorder %s11, 0
    %p31 = por %p29, %p30
    %p32 = scmp.ne.s32.totalorder %s21, %s24
    %p33 = scmp.eq.s32.totalorder %s16, 1
    %p34 = por %p32, %p33
    %p35 = scmp.ne.s32.totalorder %s24, %s25
    %p36 = scmp.eq.s32.totalorder %s16, 0
    %p37 = por %p35, %p36
    %p38 = scmp.ne.s32.totalorder %s24, %s25
    %p39 = scmp.eq.s32.totalorder %s17, 1
    %p40 = por %p38, %p39
    %p42 = scmp.ne.s32.totalorder %s25, %s41
    %p43 = scmp.eq.s32.totalorder %s17, 0
    %p44 = por %p42, %p43
    %s46 = sadd.s32 %s45, 1
    %p49 = scmp.eq.s32.totalorder %s11, 1
    %p50 = scmp.ne.s32.totalorder %s45, %s47
    %p51 = scmp.eq.s32.totalorder %s11, 0
    %p52 = por %p50, %p51
    %p53 = scmp.ne.s32.totalorder %s45, %s47
    %p54 = scmp.eq.s32.totalorder %s16, 1
    %p55 = por %p53, %p54
    %p56 = scmp.ne.s32.totalorder %s47, %s48
    %p57 = scmp.eq.s32.totalorder %s16, 0
    %p58 = por %p56, %p57
    %p59 = scmp.ne.s32.totalorder %s47, %s48
    %p60 = scmp.eq.s32.totalorder %s17, 1
    %p61 = por %p59, %p60
    %p63 = scmp.ne.s32.totalorder %s48, %s62
    %p64 = scmp.eq.s32.totalorder %s17, 0
    %p65 = por %p63, %p64
    %s67 = sadd.s32 %s66, 1
    %p70 = scmp.eq.s32.totalorder %s11, 1
    %p71 = scmp.ne.s32.totalorder %s66, %s68
    %p72 = scmp.eq.s32.totalorder %s11, 0
    %p73 = por %p71, %p72
    %p74 = scmp.ne.s32.totalorder %s66, %s68
    %p75 = scmp.eq.s32.totalorder %s16, 1
    %p76 = por %p74, %p75
    %p77 = scmp.ne.s32.totalorder %s68, %s69
    %p78 = scmp.eq.s32.totalorder %s16, 0
    %p79 = por %p77, %p78
    %p80 = scmp.ne.s32.totalorder %s68, %s69
    %p81 = scmp.eq.s32.totalorder %s17, 1
    %p82 = por %p80, %p81
    %p84 = scmp.ne.s32.totalorder %s69, %s83
    %p85 = scmp.eq.s32.totalorder %s17, 0
    %p86 = por %p84, %p85
    %s88 = sadd.s32 %s87, 1
    %p91 = scmp.eq.s32.totalorder %s11, 1
    %p92 = scmp.ne.s32.totalorder %s87, %s89
    %p93 = scmp.eq.s32.totalorder %s11, 0
    %p94 = por %p92, %p93
    %p95 = scmp.ne.s32.totalorder %s87, %s89
    %p96 = scmp.eq.s32.totalorder %s16, 1
    %p97 = por %p95, %p96
    %p98 = scmp.ne.s32.totalorder %s89, %s90
    %p99 = scmp.eq.s32.totalorder %s16, 0
    %p100 = por %p98, %p99
    %p101 = scmp.ne.s32.totalorder %s89, %s90
    %p102 = scmp.eq.s32.totalorder %s17, 1
    %p103 = por %p101, %p102
    %p105 = scmp.ne.s32.totalorder %s90, %s104
    %p106 = scmp.eq.s32.totalorder %s17, 0
    %p107 = por %p105, %p106
    %s109 = sadd.s32 %s108, 1
    %p112 = scmp.eq.s32.totalorder %s11, 1
    %p113 = scmp.ne.s32.totalorder %s108, %s110
    %p114 = scmp.eq.s32.totalorder %s11, 0
    %p115 = por %p113, %p114
    %p116 = scmp.ne.s32.totalorder %s108, %s110
    %p117 = scmp.eq.s32.totalorder %s16, 1
    %p118 = por %p116, %p117
    %p119 = scmp.ne.s32.totalorder %s110, %s111
    %p120 = scmp.eq.s32.totalorder %s16, 0
    %p121 = por %p119, %p120
    %p122 = scmp.ne.s32.totalorder %s110, %s111
    %p123 = scmp.eq.s32.totalorder %s17, 1
    %p124 = por %p122, %p123
    %p126 = scmp.ne.s32.totalorder %s111, %s125
    %p127 = scmp.eq.s32.totalorder %s17, 0
    %p128 = por %p126, %p127
    %s129 = ssub.s32 %s11, %s18
    %p130 = scmp.eq.s32.totalorder %s129, 0
    %s132 = sadd.s32 %s131, 1
    %s133 = scalar_select %p130, %s131, %s132
    %p136 = pneg %p130
    %p137 = scmp.eq.s32.totalorder %s11, 1
    %p138 = por %p136, %p137
    %p139 = scmp.ne.s32.totalorder %s131, %s134
    %p140 = scmp.eq.s32.totalorder %s11, 0
    %p141 = por %p139, %p140
    %p142 = scmp.ne.s32.totalorder %s131, %s134
    %p143 = scmp.eq.s32.totalorder %s16, 1
    %p144 = por %p142, %p143
    %p145 = scmp.ne.s32.totalorder %s134, %s135
    %p146 = scmp.eq.s32.totalorder %s16, 0
    %p147 = por %p145, %p146
    %p148 = scmp.ne.s32.totalorder %s134, %s135
    %p149 = scmp.eq.s32.totalorder %s17, 1
    %p150 = por %p148, %p149
    %p152 = scmp.ne.s32.totalorder %s135, %s151
    %p153 = scmp.eq.s32.totalorder %s17, 0
    %p154 = por %p152, %p153
    %p155 = scmp.le.s32.totalorder 1, %s11
    %p156 = scmp.lt.s32.totalorder %s11, 3
    %p157 = pnand %p155, %p156
    %p158 = pneg %p157
    // Predicated region
    $region9: #{tpu_custom_call.1} parent=5 // pred_check
      _
    $region10: #{tpu_custom_call.1} parent=5 // pred_check_branch
      %160 = sbr.rel (%p157) target = $region12
    $region11: #{tpu_custom_call.1} parent=5 // pred_region
      %s161 = ssub.s32 %s11, 1
      // Predicated region
      $region13: #{tpu_custom_call.1} parent=11 // pred_check
        %p162 = pneg %p58
      $region14: #{tpu_custom_call.1} parent=11 // pred_check_branch
        %164 = sbr.rel (%p162) target = $region16
      $region15: #{tpu_custom_call.1} parent=11 // pred_region
        _
      $region16: #{tpu_custom_call.1} parent=11 // pred_fallthru
        _
      // Predicated region
      $region17: #{tpu_custom_call.1} parent=11 // pred_check
        %p165 = pneg %p79
      $region18: #{tpu_custom_call.1} parent=11 // pred_check_branch
        %167 = sbr.rel (%p165) target = $region20
      $region19: #{tpu_custom_call.1} parent=11 // pred_region
        _
      $region20: #{tpu_custom_call.1} parent=11 // pred_fallthru
        _
      // Predicated region
      $region21: #{tpu_custom_call.1} parent=11 // pred_check
        %p168 = pneg %p100
      $region22: #{tpu_custom_call.1} parent=11 // pred_check_branch
        %170 = sbr.rel (%p168) target = $region24
      $region23: #{tpu_custom_call.1} parent=11 // pred_region
        _
      $region24: #{tpu_custom_call.1} parent=11 // pred_fallthru
        _
      // Predicated region
      $region25: #{tpu_custom_call.1} parent=11 // pred_check
        %p171 = pneg %p121
      $region26: #{tpu_custom_call.1} parent=11 // pred_check_branch
        %173 = sbr.rel (%p171) target = $region28
      $region27: #{tpu_custom_call.1} parent=11 // pred_region
        _
      $region28: #{tpu_custom_call.1} parent=11 // pred_fallthru
        _
    $region12: #{tpu_custom_call.1} parent=5 // pred_fallthru
      _
    %p174 = scmp.lt.s32.totalorder %s11, 2
    // Predicated region
    $region29: #{tpu_custom_call.1} parent=5 // pred_check
      %p175 = pneg %p174
    $region30: #{tpu_custom_call.1} parent=5 // pred_check_branch
      %177 = sbr.rel (%p175) target = $region32
    $region31: #{tpu_custom_call.1} parent=5 // pred_region
      // Predicated region
      $region33: #{tpu_custom_call.1} parent=31 // pred_check
        %p178 = pneg %p31
      $region34: #{tpu_custom_call.1} parent=31 // pred_check_branch
        %180 = sbr.rel (%p178) target = $region36
      $region35: #{tpu_custom_call.1} parent=31 // pred_region
        %s181 = smul.u32 16, %s11
        %p182 = scmp.lt.s32.totalorder %s181, 31
        %s183 = scalar_select %p182, %s181, 31
        %s184 = smul.addr %s183, 8
        %s185 = scalar_lea.vmem %s0, %s184
        %s186 = smul.u32 16, %s11
      $region36: #{tpu_custom_call.1} parent=31 // pred_fallthru
        _
    $region32: #{tpu_custom_call.1} parent=5 // pred_fallthru
      _
    %p187 = scmp.le.s32.totalorder 1, %s11
    %p188 = scmp.lt.s32.totalorder %s11, 3
    %p189 = pnand %p187, %p188
    %p190 = pneg %p189
    // Predicated region
    $region37: #{tpu_custom_call.1} parent=5 // pred_check
      _
    $region38: #{tpu_custom_call.1} parent=5 // pred_check_branch
      %192 = sbr.rel (%p189) target = $region40
    $region39: #{tpu_custom_call.1} parent=5 // pred_region
      %s193 = ssub.s32 %s11, 1
      %s194 = smul.u32 16, %s16
      %p195 = scmp.lt.s32.totalorder %s194, 31
      %s196 = scalar_select %p195, %s194, 31
      %s197 = smul.addr %s196, 8
      %s198 = scalar_lea.vmem %s0, %s197
      %p199 = pneg %p37
      %p200 = pneg %p34
      %p201 = pneg %p58
      %p202 = pneg %p55
      %p203 = pneg %p79
      %p204 = pneg %p76
      %p205 = pneg %p100
      %p206 = pneg %p97
      %p207 = pneg %p121
      %p208 = pneg %p118
      %p209 = pneg %p147
      %p210 = pneg %p144
      %s211 = smul.u32 16, %s16
      %p212 = scmp.lt.s32.totalorder %s211, 31
      %s213 = scalar_select %p212, %s211, 31
      %s214 = smul.addr %s213, 8
      %s215 = scalar_lea.vmem %s5, %s214
      %s216 = smul.u32 16, %s16
      %p217 = scmp.lt.s32.totalorder %s216, 31
      %s218 = scalar_select %p217, %s216, 31
      %s219 = smul.addr %s218, 8
      %s220 = scalar_lea.vmem %s0, %s219
      %s221 = smul.u32 16, %s16
      %s222 = smul.u32 16, %s16
      %p223 = scmp.lt.s32.totalorder %s222, 31
      %s224 = scalar_select %p223, %s222, 31
      %s225 = smul.addr %s224, 8
      %s226 = scalar_lea.vmem %s5, %s225
      %s227 = smul.u32 16, %s16
      %v228 = vld [vmem:[%s220] sm:$0xff]
      %v229 = vld [vmem:[%s220 + $0x8] sm:$0xff]
      %v230 = vld [vmem:[%s220 + $0x10] sm:$0xff]
      %v231 = vld [vmem:[%s220 + $0x18] sm:$0xff]
      %v232 = vld [vmem:[%s220 + $0x20] sm:$0xff]
      %v233 = vld [vmem:[%s220 + $0x28] sm:$0xff]
      %v234 = vld [vmem:[%s220 + $0x30] sm:$0xff]
      %v235 = vld [vmem:[%s220 + $0x38] sm:$0xff]
      %v236 = vld [vmem:[%s220 + $0x40] sm:$0xff]
      %v237 = vld [vmem:[%s220 + $0x48] sm:$0xff]
      %v238 = vld [vmem:[%s220 + $0x50] sm:$0xff]
      %v239 = vld [vmem:[%s220 + $0x58] sm:$0xff]
      %v240 = vld [vmem:[%s220 + $0x60] sm:$0xff]
      %v241 = vld [vmem:[%s220 + $0x68] sm:$0xff]
      %v242 = vld [vmem:[%s220 + $0x70] sm:$0xff]
      %v243 = vld [vmem:[%s220 + $0x78] sm:$0xff]
      %v244 = vld [vmem:[%s1] sm:$0xff]
      %v245 = vld [vmem:[%s1 + $0x8] sm:$0xff]
      %v246 = vld [vmem:[%s1 + $0x10] sm:$0xff]
      %v247 = vld [vmem:[%s1 + $0x18] sm:$0xff]
      %v248 = vld [vmem:[%s1 + $0x20] sm:$0xff]
      %v249 = vld [vmem:[%s1 + $0x28] sm:$0xff]
      %v250 = vld [vmem:[%s1 + $0x30] sm:$0xff]
      %v251 = vld [vmem:[%s1 + $0x38] sm:$0xff]
      %v252 = vld [vmem:[%s2] sm:$0x1]
      %v254 = vperm.slane %v252, 0
      %vm256 = vcmask 523264
      %v258 = vsel %vm256, %v228, 0
      %v261 = vsel %vm256, %v229, 0
      %v264 = vsel %vm256, %v230, 0
      %v267 = vsel %vm256, %v231, 0
      %v270 = vsel %vm256, %v232, 0
      %v273 = vsel %vm256, %v233, 0
      %v276 = vsel %vm256, %v234, 0
      %v279 = vsel %vm256, %v235, 0
      %v282 = vsel %vm256, %v236, 0
      %v285 = vsel %vm256, %v237, 0
      %v288 = vsel %vm256, %v238, 0
      %v291 = vsel %vm256, %v239, 0
      %v294 = vsel %vm256, %v240, 0
      %v297 = vsel %vm256, %v241, 0
      %v300 = vsel %vm256, %v242, 0
      %v303 = vsel %vm256, %v243, 0
      %305 = vmatpush.msra.mxu0 0.0
      %306 = vmatpush.msra.mxu0 0.0
      %307 = vmatpush.msra.mxu0 0.0
      %308 = vmatpush.msra.mxu0 0.0
      %309 = vmatpush.msra.mxu0 0.0
      %310 = vmatpush.msra.mxu0 0.0
      %311 = vmatpush.msra.mxu0 0.0
      %312 = vmatpush.msra.mxu0 0.0
      %313 = vmatpush.msra.mxu0 %v251
      %314 = vmatpush.msra.mxu0 %v250
      %315 = vmatpush.msra.mxu0 %v249
      %316 = vmatpush.msra.mxu0 %v248
      %317 = vmatpush.msra.mxu0 %v247
      %318 = vmatpush.msra.mxu0 %v246
      %319 = vmatpush.msra.mxu0 %v245
      %320 = vmatpush.msra.mxu0 %v244
      %321 = vmatmul.f32.gmra.mxu0 %v258
      %v322 = vpop.f32.mrf.mxu0
      %v323 = vadd.f32 %v254, %v322
      %324 = vmatmul.f32.gmra.mxu0 %v261
      %v325 = vpop.f32.mrf.mxu0
      %v326 = vadd.f32 %v254, %v325
      %327 = vmatmul.f32.gmra.mxu0 %v264
      %v328 = vpop.f32.mrf.mxu0
      %v329 = vadd.f32 %v254, %v328
      %330 = vmatmul.f32.gmra.mxu0 %v267
      %v331 = vpop.f32.mrf.mxu0
      %v332 = vadd.f32 %v254, %v331
      %333 = vmatmul.f32.gmra.mxu0 %v270
      %v334 = vpop.f32.mrf.mxu0
      %v335 = vadd.f32 %v254, %v334
      %336 = vmatmul.f32.gmra.mxu0 %v273
      %v337 = vpop.f32.mrf.mxu0
      %v338 = vadd.f32 %v254, %v337
      %339 = vmatmul.f32.gmra.mxu0 %v276
      %v340 = vpop.f32.mrf.mxu0
      %v341 = vadd.f32 %v254, %v340
      %342 = vmatmul.f32.gmra.mxu0 %v279
      %v343 = vpop.f32.mrf.mxu0
      %v344 = vadd.f32 %v254, %v343
      %345 = vmatmul.f32.gmra.mxu0 %v282
      %v346 = vpop.f32.mrf.mxu0
      %v347 = vadd.f32 %v254, %v346
      %348 = vmatmul.f32.gmra.mxu0 %v285
      %v349 = vpop.f32.mrf.mxu0
      %v350 = vadd.f32 %v254, %v349
      %351 = vmatmul.f32.gmra.mxu0 %v288
      %v352 = vpop.f32.mrf.mxu0
      %v353 = vadd.f32 %v254, %v352
      %354 = vmatmul.f32.gmra.mxu0 %v291
      %v355 = vpop.f32.mrf.mxu0
      %v356 = vadd.f32 %v254, %v355
      %357 = vmatmul.f32.gmra.mxu0 %v294
      %v358 = vpop.f32.mrf.mxu0
      %v359 = vadd.f32 %v254, %v358
      %360 = vmatmul.f32.gmra.mxu0 %v297
      %v361 = vpop.f32.mrf.mxu0
      %v362 = vadd.f32 %v254, %v361
      %363 = vmatmul.f32.gmra.mxu0 %v300
      %v364 = vpop.f32.mrf.mxu0
      %v365 = vadd.f32 %v254, %v364
      %366 = vmatmul.f32.gmra.mxu0 %v303
      %v367 = vpop.f32.mrf.mxu0
      %v368 = vadd.f32 %v254, %v367
      %369 = vdwg.mxu0
      %v370 = vmax.f32 %v323, 0.0
      %v371 = vmax.f32 %v326, 0.0
      %v372 = vmax.f32 %v329, 0.0
      %v373 = vmax.f32 %v332, 0.0
      %v374 = vmax.f32 %v335, 0.0
      %v375 = vmax.f32 %v338, 0.0
      %v376 = vmax.f32 %v341, 0.0
      %v377 = vmax.f32 %v344, 0.0
      %v378 = vmax.f32 %v347, 0.0
      %v379 = vmax.f32 %v350, 0.0
      %v380 = vmax.f32 %v353, 0.0
      %v381 = vmax.f32 %v356, 0.0
      %v382 = vmax.f32 %v359, 0.0
      %v383 = vmax.f32 %v362, 0.0
      %v384 = vmax.f32 %v365, 0.0
      %v385 = vmax.f32 %v368, 0.0
      %v386 = vld [vmem:[%s3] sm:$0xff]
      %v387 = vld [vmem:[%s3 + $0x8] sm:$0xff]
      %v388 = vld [vmem:[%s3 + $0x10] sm:$0xff]
      %v389 = vld [vmem:[%s3 + $0x18] sm:$0xff]
      %v390 = vld [vmem:[%s3 + $0x20] sm:$0xff]
      %v391 = vld [vmem:[%s3 + $0x28] sm:$0xff]
      %v392 = vld [vmem:[%s3 + $0x30] sm:$0xff]
      %v393 = vld [vmem:[%s3 + $0x38] sm:$0xff]
      %v394 = vld [vmem:[%s3 + $0x40] sm:$0xff]
      %v395 = vld [vmem:[%s3 + $0x48] sm:$0xff]
      %v396 = vld [vmem:[%s3 + $0x50] sm:$0xff]
      %v397 = vld [vmem:[%s3 + $0x58] sm:$0xff]
      %v398 = vld [vmem:[%s3 + $0x60] sm:$0xff]
      %v399 = vld [vmem:[%s3 + $0x68] sm:$0xff]
      %v400 = vld [vmem:[%s3 + $0x70] sm:$0xff]
      %v401 = vld [vmem:[%s3 + $0x78] sm:$0xff]
      %v402 = vld [vmem:[%s3 + $0x80] sm:$0xff]
      %v403 = vld [vmem:[%s3 + $0x88] sm:$0xff]
      %v404 = vld [vmem:[%s3 + $0x90] sm:$0xff]
      %v405 = vld [vmem:[%s3 + $0x98] sm:$0xff]
      %v406 = vld [vmem:[%s3 + $0xa0] sm:$0xff]
      %v407 = vld [vmem:[%s3 + $0xa8] sm:$0xff]
      %v408 = vld [vmem:[%s3 + $0xb0] sm:$0xff]
      %v409 = vld [vmem:[%s3 + $0xb8] sm:$0xff]
      %v410 = vld [vmem:[%s3 + $0xc0] sm:$0xff]
      %v411 = vld [vmem:[%s3 + $0xc8] sm:$0xff]
      %v412 = vld [vmem:[%s3 + $0xd0] sm:$0xff]
      %v413 = vld [vmem:[%s3 + $0xd8] sm:$0xff]
      %v414 = vld [vmem:[%s3 + $0xe0] sm:$0xff]
      %v415 = vld [vmem:[%s3 + $0xe8] sm:$0xff]
      %v416 = vld [vmem:[%s3 + $0xf0] sm:$0xff]
      %v417 = vld [vmem:[%s3 + $0xf8] sm:$0xff]
      %v418 = vld [vmem:[%s4] sm:$0x3]
      %v420 = vperm.slane %v418, 0
      %v421 = vperm.slane %v418, 1
      %424 = vmatpush.msra.mxu0 %v416
      %425 = vmatpush.msra.mxu0 %v414
      %426 = vmatpush.msra.mxu0 %v412
      %427 = vmatpush.msra.mxu0 %v410
      %428 = vmatpush.msra.mxu0 %v408
      %429 = vmatpush.msra.mxu0 %v406
      %430 = vmatpush.msra.mxu0 %v404
      %431 = vmatpush.msra.mxu0 %v402
      %432 = vmatpush.msra.mxu0 %v400
      %433 = vmatpush.msra.mxu0 %v398
      %434 = vmatpush.msra.mxu0 %v396
      %435 = vmatpush.msra.mxu0 %v394
      %436 = vmatpush.msra.mxu0 %v392
      %437 = vmatpush.msra.mxu0 %v390
      %438 = vmatpush.msra.mxu0 %v388
      %439 = vmatpush.msra.mxu0 %v386
      %440 = vmatmul.f32.gmra.mxu0 %v370
      %v441 = vpop.f32.mrf.mxu0
      %v442 = vadd.f32 %v420, %v441
      %443 = vmatmul.f32.gmra.mxu0 %v371
      %v444 = vpop.f32.mrf.mxu0
      %v445 = vadd.f32 %v420, %v444
      %446 = vmatmul.f32.gmra.mxu0 %v372
      %v447 = vpop.f32.mrf.mxu0
      %v448 = vadd.f32 %v420, %v447
      %449 = vmatmul.f32.gmra.mxu0 %v373
      %v450 = vpop.f32.mrf.mxu0
      %v451 = vadd.f32 %v420, %v450
      %452 = vmatmul.f32.gmra.mxu0 %v374
      %v453 = vpop.f32.mrf.mxu0
      %v454 = vadd.f32 %v420, %v453
      %455 = vmatmul.f32.gmra.mxu0 %v375
      %v456 = vpop.f32.mrf.mxu0
      %v457 = vadd.f32 %v420, %v456
      %458 = vmatmul.f32.gmra.mxu0 %v376
      %v459 = vpop.f32.mrf.mxu0
      %v460 = vadd.f32 %v420, %v459
      %461 = vmatmul.f32.gmra.mxu0 %v377
      %v462 = vpop.f32.mrf.mxu0
      %v463 = vadd.f32 %v420, %v462
      %464 = vmatmul.f32.gmra.mxu0 %v378
      %v465 = vpop.f32.mrf.mxu0
      %v466 = vadd.f32 %v420, %v465
      %467 = vmatmul.f32.gmra.mxu0 %v379
      %v468 = vpop.f32.mrf.mxu0
      %v469 = vadd.f32 %v420, %v468
      %470 = vmatmul.f32.gmra.mxu0 %v380
      %v471 = vpop.f32.mrf.mxu0
      %v472 = vadd.f32 %v420, %v471
      %473 = vmatmul.f32.gmra.mxu0 %v381
      %v474 = vpop.f32.mrf.mxu0
      %v475 = vadd.f32 %v420, %v474
      %476 = vmatmul.f32.gmra.mxu0 %v382
      %v477 = vpop.f32.mrf.mxu0
      %v478 = vadd.f32 %v420, %v477
      %479 = vmatmul.f32.gmra.mxu0 %v383
      %v480 = vpop.f32.mrf.mxu0
      %v481 = vadd.f32 %v420, %v480
      %482 = vmatmul.f32.gmra.mxu0 %v384
      %v483 = vpop.f32.mrf.mxu0
      %v484 = vadd.f32 %v420, %v483
      %485 = vmatmul.f32.gmra.mxu0 %v385
      %v486 = vpop.f32.mrf.mxu0
      %v487 = vadd.f32 %v420, %v486
      %488 = vdwg.mxu0
      %489 = vmatpush.msra.mxu0 %v417
      %490 = vmatpush.msra.mxu0 %v415
      %491 = vmatpush.msra.mxu0 %v413
      %492 = vmatpush.msra.mxu0 %v411
      %493 = vmatpush.msra.mxu0 %v409
      %494 = vmatpush.msra.mxu0 %v407
      %495 = vmatpush.msra.mxu0 %v405
      %496 = vmatpush.msra.mxu0 %v403
      %497 = vmatpush.msra.mxu0 %v401
      %498 = vmatpush.msra.mxu0 %v399
      %499 = vmatpush.msra.mxu0 %v397
      %500 = vmatpush.msra.mxu0 %v395
      %501 = vmatpush.msra.mxu0 %v393
      %502 = vmatpush.msra.mxu0 %v391
      %503 = vmatpush.msra.mxu0 %v389
      %504 = vmatpush.msra.mxu0 %v387
      %505 = vmatmul.f32.gmra.mxu0 %v370
      %v506 = vpop.f32.mrf.mxu0
      %v507 = vadd.f32 %v421, %v506
      %508 = vmatmul.f32.gmra.mxu0 %v371
      %v509 = vpop.f32.mrf.mxu0
      %v510 = vadd.f32 %v421, %v509
      %511 = vmatmul.f32.gmra.mxu0 %v372
      %v512 = vpop.f32.mrf.mxu0
      %v513 = vadd.f32 %v421, %v512
      %514 = vmatmul.f32.gmra.mxu0 %v373
      %v515 = vpop.f32.mrf.mxu0
      %v516 = vadd.f32 %v421, %v515
      %517 = vmatmul.f32.gmra.mxu0 %v374
      %v518 = vpop.f32.mrf.mxu0
      %v519 = vadd.f32 %v421, %v518
      %520 = vmatmul.f32.gmra.mxu0 %v375
      %v521 = vpop.f32.mrf.mxu0
      %v522 = vadd.f32 %v421, %v521
      %523 = vmatmul.f32.gmra.mxu0 %v376
      %v524 = vpop.f32.mrf.mxu0
      %v525 = vadd.f32 %v421, %v524
      %526 = vmatmul.f32.gmra.mxu0 %v377
      %v527 = vpop.f32.mrf.mxu0
      %v528 = vadd.f32 %v421, %v527
      %529 = vmatmul.f32.gmra.mxu0 %v378
      %v530 = vpop.f32.mrf.mxu0
      %v531 = vadd.f32 %v421, %v530
      %532 = vmatmul.f32.gmra.mxu0 %v379
      %v533 = vpop.f32.mrf.mxu0
      %v534 = vadd.f32 %v421, %v533
      %535 = vmatmul.f32.gmra.mxu0 %v380
      %v536 = vpop.f32.mrf.mxu0
      %v537 = vadd.f32 %v421, %v536
      %538 = vmatmul.f32.gmra.mxu0 %v381
      %v539 = vpop.f32.mrf.mxu0
      %v540 = vadd.f32 %v421, %v539
      %541 = vmatmul.f32.gmra.mxu0 %v382
      %v542 = vpop.f32.mrf.mxu0
      %v543 = vadd.f32 %v421, %v542
      %544 = vmatmul.f32.gmra.mxu0 %v383
      %v545 = vpop.f32.mrf.mxu0
      %v546 = vadd.f32 %v421, %v545
      %547 = vmatmul.f32.gmra.mxu0 %v384
      %v548 = vpop.f32.mrf.mxu0
      %v549 = vadd.f32 %v421, %v548
      %550 = vmatmul.f32.gmra.mxu0 %v385
      %v551 = vpop.f32.mrf.mxu0
      %v552 = vadd.f32 %v421, %v551
      %553 = vdwg.mxu0
      %v554 = vmul.f32 %v442, %v507
      %v555 = vmul.f32 %v445, %v510
      %v556 = vmul.f32 %v448, %v513
      %v557 = vmul.f32 %v451, %v516
      %v558 = vmul.f32 %v454, %v519
      %v559 = vmul.f32 %v457, %v522
      %v560 = vmul.f32 %v460, %v525
      %v561 = vmul.f32 %v463, %v528
      %v562 = vmul.f32 %v466, %v531
      %v563 = vmul.f32 %v469, %v534
      %v564 = vmul.f32 %v472, %v537
      %v565 = vmul.f32 %v475, %v540
      %v566 = vmul.f32 %v478, %v543
      %v567 = vmul.f32 %v481, %v546
      %v568 = vmul.f32 %v484, %v549
      %v569 = vmul.f32 %v487, %v552
      %570 = vadd.xlane.f32.xlu0 %v554
      %v571 = vpop.xlane.xlu0 %570
      %572 = vadd.xlane.f32.xlu0 %v555
      %v573 = vpop.xlane.xlu0 %572
      %574 = vadd.xlane.f32.xlu0 %v556
      %v575 = vpop.xlane.xlu0 %574
      %576 = vadd.xlane.f32.xlu0 %v557
      %v577 = vpop.xlane.xlu0 %576
      %578 = vadd.xlane.f32.xlu0 %v558
      %v579 = vpop.xlane.xlu0 %578
      %580 = vadd.xlane.f32.xlu0 %v559
      %v581 = vpop.xlane.xlu0 %580
      %582 = vadd.xlane.f32.xlu0 %v560
      %v583 = vpop.xlane.xlu0 %582
      %584 = vadd.xlane.f32.xlu0 %v561
      %v585 = vpop.xlane.xlu0 %584
      %586 = vadd.xlane.f32.xlu0 %v562
      %v587 = vpop.xlane.xlu0 %586
      %588 = vadd.xlane.f32.xlu0 %v563
      %v589 = vpop.xlane.xlu0 %588
      %590 = vadd.xlane.f32.xlu0 %v564
      %v591 = vpop.xlane.xlu0 %590
      %592 = vadd.xlane.f32.xlu0 %v565
      %v593 = vpop.xlane.xlu0 %592
      %594 = vadd.xlane.f32.xlu0 %v566
      %v595 = vpop.xlane.xlu0 %594
      %596 = vadd.xlane.f32.xlu0 %v567
      %v597 = vpop.xlane.xlu0 %596
      %598 = vadd.xlane.f32.xlu0 %v568
      %v599 = vpop.xlane.xlu0 %598
      %600 = vadd.xlane.f32.xlu0 %v569
      %v601 = vpop.xlane.xlu0 %600
      %v602 = vmul.f32 %v442, %v442
      %v603 = vmul.f32 %v445, %v445
      %v604 = vmul.f32 %v448, %v448
      %v605 = vmul.f32 %v451, %v451
      %v606 = vmul.f32 %v454, %v454
      %v607 = vmul.f32 %v457, %v457
      %v608 = vmul.f32 %v460, %v460
      %v609 = vmul.f32 %v463, %v463
      %v610 = vmul.f32 %v466, %v466
      %v611 = vmul.f32 %v469, %v469
      %v612 = vmul.f32 %v472, %v472
      %v613 = vmul.f32 %v475, %v475
      %v614 = vmul.f32 %v478, %v478
      %v615 = vmul.f32 %v481, %v481
      %v616 = vmul.f32 %v484, %v484
      %v617 = vmul.f32 %v487, %v487
      %618 = vadd.xlane.f32.xlu0 %v602
      %v619 = vpop.xlane.xlu0 %618
      %620 = vadd.xlane.f32.xlu0 %v603
      %v621 = vpop.xlane.xlu0 %620
      %622 = vadd.xlane.f32.xlu0 %v604
      %v623 = vpop.xlane.xlu0 %622
      %624 = vadd.xlane.f32.xlu0 %v605
      %v625 = vpop.xlane.xlu0 %624
      %626 = vadd.xlane.f32.xlu0 %v606
      %v627 = vpop.xlane.xlu0 %626
      %628 = vadd.xlane.f32.xlu0 %v607
      %v629 = vpop.xlane.xlu0 %628
      %630 = vadd.xlane.f32.xlu0 %v608
      %v631 = vpop.xlane.xlu0 %630
      %632 = vadd.xlane.f32.xlu0 %v609
      %v633 = vpop.xlane.xlu0 %632
      %634 = vadd.xlane.f32.xlu0 %v610
      %v635 = vpop.xlane.xlu0 %634
      %636 = vadd.xlane.f32.xlu0 %v611
      %v637 = vpop.xlane.xlu0 %636
      %638 = vadd.xlane.f32.xlu0 %v612
      %v639 = vpop.xlane.xlu0 %638
      %640 = vadd.xlane.f32.xlu0 %v613
      %v641 = vpop.xlane.xlu0 %640
      %642 = vadd.xlane.f32.xlu0 %v614
      %v643 = vpop.xlane.xlu0 %642
      %644 = vadd.xlane.f32.xlu0 %v615
      %v645 = vpop.xlane.xlu0 %644
      %646 = vadd.xlane.f32.xlu0 %v616
      %v647 = vpop.xlane.xlu0 %646
      %648 = vadd.xlane.f32.xlu0 %v617
      %v649 = vpop.xlane.xlu0 %648
      %v650 = vmul.f32 %v507, %v507
      %v651 = vmul.f32 %v510, %v510
      %v652 = vmul.f32 %v513, %v513
      %v653 = vmul.f32 %v516, %v516
      %v654 = vmul.f32 %v519, %v519
      %v655 = vmul.f32 %v522, %v522
      %v656 = vmul.f32 %v525, %v525
      %v657 = vmul.f32 %v528, %v528
      %v658 = vmul.f32 %v531, %v531
      %v659 = vmul.f32 %v534, %v534
      %v660 = vmul.f32 %v537, %v537
      %v661 = vmul.f32 %v540, %v540
      %v662 = vmul.f32 %v543, %v543
      %v663 = vmul.f32 %v546, %v546
      %v664 = vmul.f32 %v549, %v549
      %v665 = vmul.f32 %v552, %v552
      %666 = vadd.xlane.f32.xlu0 %v650
      %v667 = vpop.xlane.xlu0 %666
      %668 = vadd.xlane.f32.xlu0 %v651
      %v669 = vpop.xlane.xlu0 %668
      %670 = vadd.xlane.f32.xlu0 %v652
      %v671 = vpop.xlane.xlu0 %670
      %672 = vadd.xlane.f32.xlu0 %v653
      %v673 = vpop.xlane.xlu0 %672
      %674 = vadd.xlane.f32.xlu0 %v654
      %v675 = vpop.xlane.xlu0 %674
      %676 = vadd.xlane.f32.xlu0 %v655
      %v677 = vpop.xlane.xlu0 %676
      %678 = vadd.xlane.f32.xlu0 %v656
      %v679 = vpop.xlane.xlu0 %678
      %680 = vadd.xlane.f32.xlu0 %v657
      %v681 = vpop.xlane.xlu0 %680
      %682 = vadd.xlane.f32.xlu0 %v658
      %v683 = vpop.xlane.xlu0 %682
      %684 = vadd.xlane.f32.xlu0 %v659
      %v685 = vpop.xlane.xlu0 %684
      %686 = vadd.xlane.f32.xlu0 %v660
      %v687 = vpop.xlane.xlu0 %686
      %688 = vadd.xlane.f32.xlu0 %v661
      %v689 = vpop.xlane.xlu0 %688
      %690 = vadd.xlane.f32.xlu0 %v662
      %v691 = vpop.xlane.xlu0 %690
      %692 = vadd.xlane.f32.xlu0 %v663
      %v693 = vpop.xlane.xlu0 %692
      %694 = vadd.xlane.f32.xlu0 %v664
      %v695 = vpop.xlane.xlu0 %694
      %696 = vadd.xlane.f32.xlu0 %v665
      %v697 = vpop.xlane.xlu0 %696
      %v698 = vmax.f32 %v619, 1e-24
      %v699 = vmax.f32 %v621, 1e-24
      %v700 = vmax.f32 %v623, 1e-24
      %v701 = vmax.f32 %v625, 1e-24
      %v702 = vmax.f32 %v627, 1e-24
      %v703 = vmax.f32 %v629, 1e-24
      %v704 = vmax.f32 %v631, 1e-24
      %v705 = vmax.f32 %v633, 1e-24
      %v706 = vmax.f32 %v635, 1e-24
      %v707 = vmax.f32 %v637, 1e-24
      %v708 = vmax.f32 %v639, 1e-24
      %v709 = vmax.f32 %v641, 1e-24
      %v710 = vmax.f32 %v643, 1e-24
      %v711 = vmax.f32 %v645, 1e-24
      %v712 = vmax.f32 %v647, 1e-24
      %v713 = vmax.f32 %v649, 1e-24
      %v714 = vrsqrt.pop %v698
      %v715 = vmul.f32 %v714, %v698
      %v716 = vmul.f32 %v715, %v714
      %v717 = vmul.f32 0.5, %v716
      %v718 = vsub.f32 1.5, %v717
      %v719 = vmul.f32 %v714, %v718
      %vm720 = vweird.f32 %v698
      %vm721 = vweird.f32 %v714
      %vm722 = vmor %vm720, %vm721
      %v723 = vsel %vm722, %v714, %v719
      %v724 = vrsqrt.pop %v699
      %v725 = vmul.f32 %v724, %v699
      %v726 = vmul.f32 %v725, %v724
      %v727 = vmul.f32 0.5, %v726
      %v728 = vsub.f32 1.5, %v727
      %v729 = vmul.f32 %v724, %v728
      %vm730 = vweird.f32 %v699
      %vm731 = vweird.f32 %v724
      %vm732 = vmor %vm730, %vm731
      %v733 = vsel %vm732, %v724, %v729
      %v734 = vrsqrt.pop %v700
      %v735 = vmul.f32 %v734, %v700
      %v736 = vmul.f32 %v735, %v734
      %v737 = vmul.f32 0.5, %v736
      %v738 = vsub.f32 1.5, %v737
      %v739 = vmul.f32 %v734, %v738
      %vm740 = vweird.f32 %v700
      %vm741 = vweird.f32 %v734
      %vm742 = vmor %vm740, %vm741
      %v743 = vsel %vm742, %v734, %v739
      %v744 = vrsqrt.pop %v701
      %v745 = vmul.f32 %v744, %v701
      %v746 = vmul.f32 %v745, %v744
      %v747 = vmul.f32 0.5, %v746
      %v748 = vsub.f32 1.5, %v747
      %v749 = vmul.f32 %v744, %v748
      %vm750 = vweird.f32 %v701
      %vm751 = vweird.f32 %v744
      %vm752 = vmor %vm750, %vm751
      %v753 = vsel %vm752, %v744, %v749
      %v754 = vrsqrt.pop %v702
      %v755 = vmul.f32 %v754, %v702
      %v756 = vmul.f32 %v755, %v754
      %v757 = vmul.f32 0.5, %v756
      %v758 = vsub.f32 1.5, %v757
      %v759 = vmul.f32 %v754, %v758
      %vm760 = vweird.f32 %v702
      %vm761 = vweird.f32 %v754
      %vm762 = vmor %vm760, %vm761
      %v763 = vsel %vm762, %v754, %v759
      %v764 = vrsqrt.pop %v703
      %v765 = vmul.f32 %v764, %v703
      %v766 = vmul.f32 %v765, %v764
      %v767 = vmul.f32 0.5, %v766
      %v768 = vsub.f32 1.5, %v767
      %v769 = vmul.f32 %v764, %v768
      %vm770 = vweird.f32 %v703
      %vm771 = vweird.f32 %v764
      %vm772 = vmor %vm770, %vm771
      %v773 = vsel %vm772, %v764, %v769
      %v774 = vrsqrt.pop %v704
      %v775 = vmul.f32 %v774, %v704
      %v776 = vmul.f32 %v775, %v774
      %v777 = vmul.f32 0.5, %v776
      %v778 = vsub.f32 1.5, %v777
      %v779 = vmul.f32 %v774, %v778
      %vm780 = vweird.f32 %v704
      %vm781 = vweird.f32 %v774
      %vm782 = vmor %vm780, %vm781
      %v783 = vsel %vm782, %v774, %v779
      %v784 = vrsqrt.pop %v705
      %v785 = vmul.f32 %v784, %v705
      %v786 = vmul.f32 %v785, %v784
      %v787 = vmul.f32 0.5, %v786
      %v788 = vsub.f32 1.5, %v787
      %v789 = vmul.f32 %v784, %v788
      %vm790 = vweird.f32 %v705
      %vm791 = vweird.f32 %v784
      %vm792 = vmor %vm790, %vm791
      %v793 = vsel %vm792, %v784, %v789
      %v794 = vrsqrt.pop %v706
      %v795 = vmul.f32 %v794, %v706
      %v796 = vmul.f32 %v795, %v794
      %v797 = vmul.f32 0.5, %v796
      %v798 = vsub.f32 1.5, %v797
      %v799 = vmul.f32 %v794, %v798
      %vm800 = vweird.f32 %v706
      %vm801 = vweird.f32 %v794
      %vm802 = vmor %vm800, %vm801
      %v803 = vsel %vm802, %v794, %v799
      %v804 = vrsqrt.pop %v707
      %v805 = vmul.f32 %v804, %v707
      %v806 = vmul.f32 %v805, %v804
      %v807 = vmul.f32 0.5, %v806
      %v808 = vsub.f32 1.5, %v807
      %v809 = vmul.f32 %v804, %v808
      %vm810 = vweird.f32 %v707
      %vm811 = vweird.f32 %v804
      %vm812 = vmor %vm810, %vm811
      %v813 = vsel %vm812, %v804, %v809
      %v814 = vrsqrt.pop %v708
      %v815 = vmul.f32 %v814, %v708
      %v816 = vmul.f32 %v815, %v814
      %v817 = vmul.f32 0.5, %v816
      %v818 = vsub.f32 1.5, %v817
      %v819 = vmul.f32 %v814, %v818
      %vm820 = vweird.f32 %v708
      %vm821 = vweird.f32 %v814
      %vm822 = vmor %vm820, %vm821
      %v823 = vsel %vm822, %v814, %v819
      %v824 = vrsqrt.pop %v709
      %v825 = vmul.f32 %v824, %v709
      %v826 = vmul.f32 %v825, %v824
      %v827 = vmul.f32 0.5, %v826
      %v828 = vsub.f32 1.5, %v827
      %v829 = vmul.f32 %v824, %v828
      %vm830 = vweird.f32 %v709
      %vm831 = vweird.f32 %v824
      %vm832 = vmor %vm830, %vm831
      %v833 = vsel %vm832, %v824, %v829
      %v834 = vrsqrt.pop %v710
      %v835 = vmul.f32 %v834, %v710
      %v836 = vmul.f32 %v835, %v834
      %v837 = vmul.f32 0.5, %v836
      %v838 = vsub.f32 1.5, %v837
      %v839 = vmul.f32 %v834, %v838
      %vm840 = vweird.f32 %v710
      %vm841 = vweird.f32 %v834
      %vm842 = vmor %vm840, %vm841
      %v843 = vsel %vm842, %v834, %v839
      %v844 = vrsqrt.pop %v711
      %v845 = vmul.f32 %v844, %v711
      %v846 = vmul.f32 %v845, %v844
      %v847 = vmul.f32 0.5, %v846
      %v848 = vsub.f32 1.5, %v847
      %v849 = vmul.f32 %v844, %v848
      %vm850 = vweird.f32 %v711
      %vm851 = vweird.f32 %v844
      %vm852 = vmor %vm850, %vm851
      %v853 = vsel %vm852, %v844, %v849
      %v854 = vrsqrt.pop %v712
      %v855 = vmul.f32 %v854, %v712
      %v856 = vmul.f32 %v855, %v854
      %v857 = vmul.f32 0.5, %v856
      %v858 = vsub.f32 1.5, %v857
      %v859 = vmul.f32 %v854, %v858
      %vm860 = vweird.f32 %v712
      %vm861 = vweird.f32 %v854
      %vm862 = vmor %vm860, %vm861
      %v863 = vsel %vm862, %v854, %v859
      %v864 = vrsqrt.pop %v713
      %v865 = vmul.f32 %v864, %v713
      %v866 = vmul.f32 %v865, %v864
      %v867 = vmul.f32 0.5, %v866
      %v868 = vsub.f32 1.5, %v867
      %v869 = vmul.f32 %v864, %v868
      %vm870 = vweird.f32 %v713
      %vm871 = vweird.f32 %v864
      %vm872 = vmor %vm870, %vm871
      %v873 = vsel %vm872, %v864, %v869
      %v874 = vmul.f32 %v571, %v723
      %v875 = vmul.f32 %v573, %v733
      %v876 = vmul.f32 %v575, %v743
      %v877 = vmul.f32 %v577, %v753
      %v878 = vmul.f32 %v579, %v763
      %v879 = vmul.f32 %v581, %v773
      %v880 = vmul.f32 %v583, %v783
      %v881 = vmul.f32 %v585, %v793
      %v882 = vmul.f32 %v587, %v803
      %v883 = vmul.f32 %v589, %v813
      %v884 = vmul.f32 %v591, %v823
      %v885 = vmul.f32 %v593, %v833
      %v886 = vmul.f32 %v595, %v843
      %v887 = vmul.f32 %v597, %v853
      %v888 = vmul.f32 %v599, %v863
      %v889 = vmul.f32 %v601, %v873
      %v890 = vmax.f32 %v667, 1e-24
      %v891 = vmax.f32 %v669, 1e-24
      %v892 = vmax.f32 %v671, 1e-24
      %v893 = vmax.f32 %v673, 1e-24
      %v894 = vmax.f32 %v675, 1e-24
      %v895 = vmax.f32 %v677, 1e-24
      %v896 = vmax.f32 %v679, 1e-24
      %v897 = vmax.f32 %v681, 1e-24
      %v898 = vmax.f32 %v683, 1e-24
      %v899 = vmax.f32 %v685, 1e-24
      %v900 = vmax.f32 %v687, 1e-24
      %v901 = vmax.f32 %v689, 1e-24
      %v902 = vmax.f32 %v691, 1e-24
      %v903 = vmax.f32 %v693, 1e-24
      %v904 = vmax.f32 %v695, 1e-24
      %v905 = vmax.f32 %v697, 1e-24
      %v906 = vrsqrt.pop %v890
      %v907 = vmul.f32 %v906, %v890
      %v908 = vmul.f32 %v907, %v906
      %v909 = vmul.f32 0.5, %v908
      %v910 = vsub.f32 1.5, %v909
      %v911 = vmul.f32 %v906, %v910
      %vm912 = vweird.f32 %v890
      %vm913 = vweird.f32 %v906
      %vm914 = vmor %vm912, %vm913
      %v915 = vsel %vm914, %v906, %v911
      %v916 = vrsqrt.pop %v891
      %v917 = vmul.f32 %v916, %v891
      %v918 = vmul.f32 %v917, %v916
      %v919 = vmul.f32 0.5, %v918
      %v920 = vsub.f32 1.5, %v919
      %v921 = vmul.f32 %v916, %v920
      %vm922 = vweird.f32 %v891
      %vm923 = vweird.f32 %v916
      %vm924 = vmor %vm922, %vm923
      %v925 = vsel %vm924, %v916, %v921
      %v926 = vrsqrt.pop %v892
      %v927 = vmul.f32 %v926, %v892
      %v928 = vmul.f32 %v927, %v926
      %v929 = vmul.f32 0.5, %v928
      %v930 = vsub.f32 1.5, %v929
      %v931 = vmul.f32 %v926, %v930
      %vm932 = vweird.f32 %v892
      %vm933 = vweird.f32 %v926
      %vm934 = vmor %vm932, %vm933
      %v935 = vsel %vm934, %v926, %v931
      %v936 = vrsqrt.pop %v893
      %v937 = vmul.f32 %v936, %v893
      %v938 = vmul.f32 %v937, %v936
      %v939 = vmul.f32 0.5, %v938
      %v940 = vsub.f32 1.5, %v939
      %v941 = vmul.f32 %v936, %v940
      %vm942 = vweird.f32 %v893
      %vm943 = vweird.f32 %v936
      %vm944 = vmor %vm942, %vm943
      %v945 = vsel %vm944, %v936, %v941
      %v946 = vrsqrt.pop %v894
      %v947 = vmul.f32 %v946, %v894
      %v948 = vmul.f32 %v947, %v946
      %v949 = vmul.f32 0.5, %v948
      %v950 = vsub.f32 1.5, %v949
      %v951 = vmul.f32 %v946, %v950
      %vm952 = vweird.f32 %v894
      %vm953 = vweird.f32 %v946
      %vm954 = vmor %vm952, %vm953
      %v955 = vsel %vm954, %v946, %v951
      %v956 = vrsqrt.pop %v895
      %v957 = vmul.f32 %v956, %v895
      %v958 = vmul.f32 %v957, %v956
      %v959 = vmul.f32 0.5, %v958
      %v960 = vsub.f32 1.5, %v959
      %v961 = vmul.f32 %v956, %v960
      %vm962 = vweird.f32 %v895
      %vm963 = vweird.f32 %v956
      %vm964 = vmor %vm962, %vm963
      %v965 = vsel %vm964, %v956, %v961
      %v966 = vrsqrt.pop %v896
      %v967 = vmul.f32 %v966, %v896
      %v968 = vmul.f32 %v967, %v966
      %v969 = vmul.f32 0.5, %v968
      %v970 = vsub.f32 1.5, %v969
      %v971 = vmul.f32 %v966, %v970
      %vm972 = vweird.f32 %v896
      %vm973 = vweird.f32 %v966
      %vm974 = vmor %vm972, %vm973
      %v975 = vsel %vm974, %v966, %v971
      %v976 = vrsqrt.pop %v897
      %v977 = vmul.f32 %v976, %v897
      %v978 = vmul.f32 %v977, %v976
      %v979 = vmul.f32 0.5, %v978
      %v980 = vsub.f32 1.5, %v979
      %v981 = vmul.f32 %v976, %v980
      %vm982 = vweird.f32 %v897
      %vm983 = vweird.f32 %v976
      %vm984 = vmor %vm982, %vm983
      %v985 = vsel %vm984, %v976, %v981
      %v986 = vrsqrt.pop %v898
      %v987 = vmul.f32 %v986, %v898
      %v988 = vmul.f32 %v987, %v986
      %v989 = vmul.f32 0.5, %v988
      %v990 = vsub.f32 1.5, %v989
      %v991 = vmul.f32 %v986, %v990
      %vm992 = vweird.f32 %v898
      %vm993 = vweird.f32 %v986
      %vm994 = vmor %vm992, %vm993
      %v995 = vsel %vm994, %v986, %v991
      %v996 = vrsqrt.pop %v899
      %v997 = vmul.f32 %v996, %v899
      %v998 = vmul.f32 %v997, %v996
      %v999 = vmul.f32 0.5, %v998
      %v1000 = vsub.f32 1.5, %v999
      %v1001 = vmul.f32 %v996, %v1000
      %vm1002 = vweird.f32 %v899
      %vm1003 = vweird.f32 %v996
      %vm1004 = vmor %vm1002, %vm1003
      %v1005 = vsel %vm1004, %v996, %v1001
      %v1006 = vrsqrt.pop %v900
      %v1007 = vmul.f32 %v1006, %v900
      %v1008 = vmul.f32 %v1007, %v1006
      %v1009 = vmul.f32 0.5, %v1008
      %v1010 = vsub.f32 1.5, %v1009
      %v1011 = vmul.f32 %v1006, %v1010
      %vm1012 = vweird.f32 %v900
      %vm1013 = vweird.f32 %v1006
      %vm1014 = vmor %vm1012, %vm1013
      %v1015 = vsel %vm1014, %v1006, %v1011
      %v1016 = vrsqrt.pop %v901
      %v1017 = vmul.f32 %v1016, %v901
      %v1018 = vmul.f32 %v1017, %v1016
      %v1019 = vmul.f32 0.5, %v1018
      %v1020 = vsub.f32 1.5, %v1019
      %v1021 = vmul.f32 %v1016, %v1020
      %vm1022 = vweird.f32 %v901
      %vm1023 = vweird.f32 %v1016
      %vm1024 = vmor %vm1022, %vm1023
      %v1025 = vsel %vm1024, %v1016, %v1021
      %v1026 = vrsqrt.pop %v902
      %v1027 = vmul.f32 %v1026, %v902
      %v1028 = vmul.f32 %v1027, %v1026
      %v1029 = vmul.f32 0.5, %v1028
      %v1030 = vsub.f32 1.5, %v1029
      %v1031 = vmul.f32 %v1026, %v1030
      %vm1032 = vweird.f32 %v902
      %vm1033 = vweird.f32 %v1026
      %vm1034 = vmor %vm1032, %vm1033
      %v1035 = vsel %vm1034, %v1026, %v1031
      %v1036 = vrsqrt.pop %v903
      %v1037 = vmul.f32 %v1036, %v903
      %v1038 = vmul.f32 %v1037, %v1036
      %v1039 = vmul.f32 0.5, %v1038
      %v1040 = vsub.f32 1.5, %v1039
      %v1041 = vmul.f32 %v1036, %v1040
      %vm1042 = vweird.f32 %v903
      %vm1043 = vweird.f32 %v1036
      %vm1044 = vmor %vm1042, %vm1043
      %v1045 = vsel %vm1044, %v1036, %v1041
      %v1046 = vrsqrt.pop %v904
      %v1047 = vmul.f32 %v1046, %v904
      %v1048 = vmul.f32 %v1047, %v1046
      %v1049 = vmul.f32 0.5, %v1048
      %v1050 = vsub.f32 1.5, %v1049
      %v1051 = vmul.f32 %v1046, %v1050
      %vm1052 = vweird.f32 %v904
      %vm1053 = vweird.f32 %v1046
      %vm1054 = vmor %vm1052, %vm1053
      %v1055 = vsel %vm1054, %v1046, %v1051
      %v1056 = vrsqrt.pop %v905
      %v1057 = vmul.f32 %v1056, %v905
      %v1058 = vmul.f32 %v1057, %v1056
      %v1059 = vmul.f32 0.5, %v1058
      %v1060 = vsub.f32 1.5, %v1059
      %v1061 = vmul.f32 %v1056, %v1060
      %vm1062 = vweird.f32 %v905
      %vm1063 = vweird.f32 %v1056
      %vm1064 = vmor %vm1062, %vm1063
      %v1065 = vsel %vm1064, %v1056, %v1061
      %v1066 = vmul.f32 %v874, %v915
      %v1067 = vmul.f32 %v875, %v925
      %v1068 = vmul.f32 %v876, %v935
      %v1069 = vmul.f32 %v877, %v945
      %v1070 = vmul.f32 %v878, %v955
      %v1071 = vmul.f32 %v879, %v965
      %v1072 = vmul.f32 %v880, %v975
      %v1073 = vmul.f32 %v881, %v985
      %v1074 = vmul.f32 %v882, %v995
      %v1075 = vmul.f32 %v883, %v1005
      %v1076 = vmul.f32 %v884, %v1015
      %v1077 = vmul.f32 %v885, %v1025
      %v1078 = vmul.f32 %v886, %v1035
      %v1079 = vmul.f32 %v887, %v1045
      %v1080 = vmul.f32 %v888, %v1055
      %v1081 = vmul.f32 %v889, %v1065
      %vm1082 = vcmask 7168
      %1083 = vst.msk [vmem:[%s226] sm:$0xff] %vm1082, %v1066
      %1084 = vst.msk [vmem:[%s226 + $0x8] sm:$0xff] %vm1082, %v1067
      %1085 = vst.msk [vmem:[%s226 + $0x10] sm:$0xff] %vm1082, %v1068
      %1086 = vst.msk [vmem:[%s226 + $0x18] sm:$0xff] %vm1082, %v1069
      %1087 = vst.msk [vmem:[%s226 + $0x20] sm:$0xff] %vm1082, %v1070
      %1088 = vst.msk [vmem:[%s226 + $0x28] sm:$0xff] %vm1082, %v1071
      %1089 = vst.msk [vmem:[%s226 + $0x30] sm:$0xff] %vm1082, %v1072
      %1090 = vst.msk [vmem:[%s226 + $0x38] sm:$0xff] %vm1082, %v1073
      %1091 = vst.msk [vmem:[%s226 + $0x40] sm:$0xff] %vm1082, %v1074
      %1092 = vst.msk [vmem:[%s226 + $0x48] sm:$0xff] %vm1082, %v1075
      %1093 = vst.msk [vmem:[%s226 + $0x50] sm:$0xff] %vm1082, %v1076
      %1094 = vst.msk [vmem:[%s226 + $0x58] sm:$0xff] %vm1082, %v1077
      %1095 = vst.msk [vmem:[%s226 + $0x60] sm:$0xff] %vm1082, %v1078
      %1096 = vst.msk [vmem:[%s226 + $0x68] sm:$0xff] %vm1082, %v1079
      %1097 = vst.msk [vmem:[%s226 + $0x70] sm:$0xff] %vm1082, %v1080
      %1098 = vst.msk [vmem:[%s226 + $0x78] sm:$0xff] %vm1082, %v1081
      %s1099 = smul.u32 16, %s16
      %p1100 = scmp.lt.s32.totalorder %s1099, 31
      %s1101 = scalar_select %p1100, %s1099, 31
      %s1102 = smul.addr %s1101, 8
      %s1103 = scalar_lea.vmem %s5, %s1102
      // Predicated region
      $region41: #{tpu_custom_call.1} parent=39 // pred_check
        %p1104 = pneg %p144
      $region42: #{tpu_custom_call.1} parent=39 // pred_check_branch
        %1106 = sbr.rel (%p1104) target = $region44
      $region43: #{tpu_custom_call.1} parent=39 // pred_region
        %s1107 = smul.u32 16, %s16
      $region44: #{tpu_custom_call.1} parent=39 // pred_fallthru
        _
    $region40: #{tpu_custom_call.1} parent=5 // pred_fallthru
      _
    %p1108 = scmp.le.s32.totalorder 2, %s11
    // Predicated region
    $region45: #{tpu_custom_call.1} parent=5 // pred_check
      %p1109 = pneg %p1108
    $region46: #{tpu_custom_call.1} parent=5 // pred_check_branch
      %1111 = sbr.rel (%p1109) target = $region48
    $region47: #{tpu_custom_call.1} parent=5 // pred_region
      %s1112 = ssub.s32 %s11, 2
      // Predicated region
      $region49: #{tpu_custom_call.1} parent=47 // pred_check
        %p1113 = pneg %p150
      $region50: #{tpu_custom_call.1} parent=47 // pred_check_branch
        %1115 = sbr.rel (%p1113) target = $region52
      $region51: #{tpu_custom_call.1} parent=47 // pred_region
        %s1116 = smul.u32 16, %s17
        %p1117 = scmp.lt.s32.totalorder %s1116, 31
        %s1118 = scalar_select %p1117, %s1116, 31
        %s1119 = smul.addr %s1118, 8
        %s1120 = scalar_lea.vmem %s5, %s1119
      $region52: #{tpu_custom_call.1} parent=47 // pred_fallthru
        _
    $region48: #{tpu_custom_call.1} parent=5 // pred_fallthru
      _
  $region6: #{tpu_custom_call.1} parent=0 // loop_footer
    %s15 = sadd.s32 1, %s11
  $region7: #{tpu_custom_call.1} parent=0 // loop_footer_branch
    %10 = sbr.rel target = $region3
  $region8: #{tpu_custom_call.1} parent=0 // loop_exit
    _

</llo_original>
